<compile_context>
chip_gen: v5e
topology: v5e:2x2
jax: 0.10.0
libtpu: 0.0.40
codegen_flags: <defaults>
</compile_context>

<pallas_src>
import math

import jax
import jax.numpy as jnp
from jax.experimental import pallas as pl
from jax.experimental.pallas import tpu as pltpu


# ---------------------------------------------------------------------------
# Filterbank construction (mirrors torchaudio.functional.melscale_fbanks).
# ---------------------------------------------------------------------------
def _hz_to_mel(freq: float, mel_scale: str = "htk") -> float:
    if mel_scale == "htk":
        return 2595.0 * math.log10(1.0 + freq / 700.0)
    # slaney
    f_min, f_sp = 0.0, 200.0 / 3
    mels = (freq - f_min) / f_sp
    min_log_hz = 1000.0
    min_log_mel = (min_log_hz - f_min) / f_sp
    logstep = math.log(6.4) / 27.0
    if freq >= min_log_hz:
        mels = min_log_mel + math.log(freq / min_log_hz) / logstep
    return mels


def _mel_to_hz(mels, mel_scale: str = "htk"):
    if mel_scale == "htk":
        return 700.0 * (10.0 ** (mels / 2595.0) - 1.0)
    # slaney
    f_min, f_sp = 0.0, 200.0 / 3
    freqs = f_min + f_sp * mels
    min_log_hz = 1000.0
    min_log_mel = (min_log_hz - f_min) / f_sp
    logstep = math.log(6.4) / 27.0
    return jnp.where(mels >= min_log_mel,
                     min_log_hz * jnp.exp(logstep * (mels - min_log_mel)),
                     freqs)


def melscale_fbanks(n_freqs, f_min, f_max, n_mels, sample_rate,
                    norm=None, mel_scale="htk"):
    """Returns fb of shape (n_freqs, n_mels), float32."""
    all_freqs = jnp.linspace(0.0, sample_rate // 2, n_freqs)
    m_min = _hz_to_mel(f_min, mel_scale)
    m_max = _hz_to_mel(f_max, mel_scale)
    m_pts = jnp.linspace(m_min, m_max, n_mels + 2)
    f_pts = _mel_to_hz(m_pts, mel_scale)

    f_diff = f_pts[1:] - f_pts[:-1]                  # (n_mels + 1,)
    slopes = f_pts[None, :] - all_freqs[:, None]     # (n_freqs, n_mels + 2)
    down = (-1.0 * slopes[:, :-2]) / f_diff[:-1]
    up = slopes[:, 2:] / f_diff[1:]
    fb = jnp.maximum(0.0, jnp.minimum(down, up))     # (n_freqs, n_mels)

    if norm == "slaney":
        enorm = 2.0 / (f_pts[2:n_mels + 2] - f_pts[:n_mels])
        fb = fb * enorm[None, :]
    return fb.astype(jnp.float32)


# ---------------------------------------------------------------------------
# Pallas kernels
# ---------------------------------------------------------------------------
def _melscale_kernel_single(x_ref, fbt_ref, o_ref):
    """Single reduction step: out = fbT @ x  (no accumulator, no branches).

    x_ref:   (F, T_TILE)      spectrogram tile (freq x time)
    fbt_ref: (n_mels, F)      transposed filterbank (resident)
    o_ref:   (n_mels, T_TILE) mel tile (time lane-dense)
    """
    o_ref[...] = jnp.dot(fbt_ref[...], x_ref[...],
                         preferred_element_type=jnp.float32).astype(o_ref.dtype)


def _make_melscale_kernel_ktiled(f_total, f_tile, need_mask):
    """K-tiled variant for very large n_stft.  fbT is resident in VMEM and
    sliced in-kernel; the ragged last freq block of x is masked to zero."""

    def kernel(x_ref, fbt_ref, o_ref, acc_ref):
        # x_ref:   (F_TILE, T_TILE)
        # fbt_ref: (n_mels, F_padk)   whole (zero-padded) fbT, constant index
        # o_ref:   (n_mels, T_TILE)
        # acc_ref: (n_mels, T_TILE) f32
        k = pl.program_id(2)

        @pl.when(k == 0)
        def _():
            acc_ref[...] = jnp.zeros_like(acc_ref)

        x = x_ref[...]
        if need_mask:
            # Rows beyond the valid freq extent of this block hold stale VMEM
            # contents -> zero them (fbT zero-columns alone are unsafe: 0*NaN).
            rows = jax.lax.broadcasted_iota(jnp.int32, x.shape, 0)
            x = jnp.where(rows < (f_total - k * f_tile), x, jnp.zeros_like(x))

        off = pl.multiple_of(k * f_tile, f_tile)
        fbt_chunk = fbt_ref[:, pl.ds(off, f_tile)]
        acc_ref[...] += jnp.dot(fbt_chunk, x, preferred_element_type=jnp.float32)

        @pl.when(k == pl.num_programs(2) - 1)
        def _():
            o_ref[...] = acc_ref[...].astype(o_ref.dtype)

    return kernel


# ---------------------------------------------------------------------------
# Wrapper
# ---------------------------------------------------------------------------
def _round_up(x, m):
    return (x + m - 1) // m * m


# Default tuning knobs (safe on v5e / v6e / v7x).
_F_SINGLE_MAX = 1536     # single reduction step up to this many freq bins
_K_CHUNK_TARGET = 1024   # target K-tile size for very large FFTs
_T_TILE_MAX = 1024       # lane-dense time tile (v6e may raise to 2048)


def _mel_matmul(x3, fbt, n_mels, *, f_single_max, k_chunk_target, t_tile_max):
    """x3: (bc, F, T), fbt: (n_mels, F)  ->  (bc, n_mels, T)."""
    bc, F, T = x3.shape
    dtype = x3.dtype
    x_isz = x3.dtype.itemsize
    fbt_isz = fbt.dtype.itemsize

    # --- time tiling: lane-dense, big tiles, ragged edge handled by Pallas ---
    t_tile = min(t_tile_max, _round_up(T, 128))
    n_t = pl.cdiv(T, t_tile)
    # v7x megacore: make sure both TensorCores get work.
    if bc * n_t == 1 and t_tile >= 256:
        t_tile = _round_up(pl.cdiv(T, 2), 128)
        n_t = pl.cdiv(T, t_tile)

    out_shape = jax.ShapeDtypeStruct((bc, n_mels, T), dtype)
    cost = pl.CostEstimate(
        flops=2 * bc * n_mels * F * T,
        transcendentals=0,
        bytes_accessed=bc * F * T * x_isz + n_mels * F * fbt_isz
        + bc * n_mels * T * x_isz)

    if F <= f_single_max:
        # ---- common case: single reduction step, no accumulator ------------
        grid = (bc, n_t)
        in_specs = [
            pl.BlockSpec((None, F, t_tile), lambda b, t: (b, 0, t)),
            pl.BlockSpec((n_mels, F), lambda b, t: (0, 0)),     # resident fbT
        ]
        out_specs = pl.BlockSpec((None, n_mels, t_tile), lambda b, t: (b, 0, t))
        scratch = []
        sem = ("parallel", "parallel")
        kernel = _melscale_kernel_single
        fbt_arr = fbt
        vmem_est = (2 * F * t_tile * x_isz + 2 * n_mels * F * fbt_isz
                    + 2 * n_mels * t_tile * x_isz)
    else:
        # ---- very large FFTs: K-tile the freq (reduction) axis --------------
        n_k0 = pl.cdiv(F, k_chunk_target)
        f_tile = _round_up(pl.cdiv(F, n_k0), 128)
        n_k = pl.cdiv(F, f_tile)
        f_padk = n_k * f_tile
        need_mask = (F % f_tile) != 0
        # fbT is a tiny constant -> zero-pad it host-side so in-kernel slices
        # stay in bounds and pad columns are exactly zero.
        fbt_arr = jnp.pad(fbt, ((0, 0), (0, f_padk - F)))

        grid = (bc, n_t, n_k)
        in_specs = [
            pl.BlockSpec((None, f_tile, t_tile), lambda b, t, k: (b, k, t)),
            pl.BlockSpec((n_mels, f_padk), lambda b, t, k: (0, 0)),  # resident
        ]
        out_specs = pl.BlockSpec((None, n_mels, t_tile),
                                 lambda b, t, k: (b, 0, t))
        scratch = [pltpu.VMEM((n_mels, t_tile), jnp.float32)]
        sem = ("parallel", "parallel", "arbitrary")
        kernel = _make_melscale_kernel_ktiled(F, f_tile, need_mask)
        vmem_est = (2 * f_tile * t_tile * x_isz + 2 * n_mels * f_padk * fbt_isz
                    + 2 * n_mels * t_tile * x_isz + n_mels * t_tile * 4)

    vmem_limit = int(min(max(vmem_est + (4 << 20), 32 << 20), 48 << 20))

    return pl.pallas_call(
        kernel,
        out_shape=out_shape,
        grid_spec=pltpu.PrefetchScalarGridSpec(
            num_scalar_prefetch=0,
            grid=grid,
            in_specs=in_specs,
            out_specs=out_specs,
            scratch_shapes=scratch),
        compiler_params=pltpu.CompilerParams(
            dimension_semantics=sem,
            vmem_limit_bytes=vmem_limit),
        cost_estimate=cost,
    )(x3, fbt_arr)


def mel_scale(specgram, fb, *, f_single_max=_F_SINGLE_MAX,
              k_chunk_target=_K_CHUNK_TARGET, t_tile_max=_T_TILE_MAX):
    """MelScale forward.

    specgram: (..., freq, time), fb: (freq, n_mels) -> (..., n_mels, time)
    """
    *lead, F, T = specgram.shape
    n_mels = fb.shape[1]
    assert fb.shape[0] == F, "fb / specgram freq mismatch"
    bc = math.prod(lead) if lead else 1

    # NOTE: torchaudio keeps fb in float32; casting to the input dtype only
    # matters for sub-f32 inputs (documented deviation, kept from v1).
    fbt = fb.T.astype(specgram.dtype)                 # (n_mels, F)
    x3 = specgram.reshape(bc, F, T)

    # Small-T regime: fold batch*channel onto the lane (time) axis so tiles
    # are not mostly padding.  One upfront relayout, amortized over the matmul.
    pack = (T < 128) and (bc > 1)
    if pack:
        x3 = jnp.transpose(x3, (1, 0, 2)).reshape(1, F, bc * T)

    out3 = _mel_matmul(x3, fbt, n_mels, f_single_max=f_single_max,
                       k_chunk_target=k_chunk_target, t_tile_max=t_tile_max)

    if pack:
        out3 = out3.reshape(n_mels, bc, T).transpose(1, 0, 2)

    return out3.reshape(*lead, n_mels, T)


# ---------------------------------------------------------------------------
# Demo / correctness check
# ---------------------------------------------------------------------------
if __name__ == "__main__":
    key = jax.random.PRNGKey(0)
    k0, k1, k2 = jax.random.split(key, 3)
    sample_rate = 16000

    def check(key_i, B, C, F, T, n_mels, **knobs):
        spec = jax.random.uniform(key_i, (B, C, F, T), jnp.float32)
        fb = melscale_fbanks(F, 0.0, float(sample_rate // 2), n_mels,
                             sample_rate, norm=None, mel_scale="htk")
        out = jax.block_until_ready(mel_scale(spec, fb, **knobs))
        ref = jnp.einsum("bcft,fm->bcmt", spec, fb,
                         precision=jax.lax.Precision.HIGHEST)
        assert out.shape == (B, C, n_mels, T)
        assert out.dtype == spec.dtype
        assert jnp.allclose(out, ref, atol=1e-3, rtol=1e-3), (
            f"mismatch, max abs err = {jnp.max(jnp.abs(out - ref))}")

    # 1) small-T packed path (batch*channel folded onto lanes), n_stft=65
    check(k0, 2, 4, 65, 48, 16)
    # 2) canonical single-K path (default n_stft=201), ragged time edge
    check(k1, 1, 2, 201, 300, 64)
    # 3) K-tiled path with a ragged freq edge (small shapes via tuning knobs)
    check(k2, 1, 1, 333, 200, 24, f_single_max=128, k_chunk_target=128)

    print("KERNEL_OK")
</pallas_src>

<mosaic_0001>
module attributes {stable_mosaic.version = 11 : i64} {
  func.func @_melscale_kernel_single(%arg0: i32, %arg1: i32, %arg2: memref<1x65x256xf32, #tpu.memory_space<vmem>>, %arg3: memref<16x65xf32, #tpu.memory_space<vmem>>, %arg4: memref<1x16x256xf32, #tpu.memory_space<vmem>>) attributes {dimension_semantics = [#tpu.dimension_semantics<parallel>, #tpu.dimension_semantics<parallel>], iteration_bounds = array<i64: 1, 2>, scalar_prefetch = 0 : i64, scratch_operands = 0 : i64, tpu.core_type = #tpu.core_type<tc>, window_params = [{transform_indices = @transform_0, window_bounds = array<i64: 1, 65, 256>}, {pipeline_mode = #tpu.pipeline_mode<synchronous>, transform_indices = @transform_1, window_bounds = array<i64: 16, 65>}, {transform_indices = @transform_2, window_bounds = array<i64: 1, 16, 256>}]} {
    %c0 = arith.constant 0 : index
    %c0_0 = arith.constant 0 : index
    %0 = vector.load %arg3[%c0, %c0_0] : memref<16x65xf32, #tpu.memory_space<vmem>>, vector<16x65xf32>
    %c0_1 = arith.constant 0 : index
    %c0_2 = arith.constant 0 : index
    %c0_3 = arith.constant 0 : index
    %1 = vector.load %arg2[%c0_1, %c0_2, %c0_3] : memref<1x65x256xf32, #tpu.memory_space<vmem>>, vector<1x65x256xf32>
    %2 = vector.shape_cast %1 : vector<1x65x256xf32> to vector<65x256xf32>
    %cst = arith.constant dense<0.000000e+00> : vector<16x256xf32>
    %3 = tpu.matmul %0, %2, %cst {dimension_numbers = #tpu.dot_dimension_numbers<[1], [0], [0], [1], [0, 0, 1, 1], [], []>} : vector<16x65xf32>, vector<65x256xf32>, vector<16x256xf32> -> vector<16x256xf32>
    %c0_4 = arith.constant 0 : index
    %c0_5 = arith.constant 0 : index
    %c0_6 = arith.constant 0 : index
    %4 = vector.load %arg4[%c0_4, %c0_5, %c0_6] : memref<1x16x256xf32, #tpu.memory_space<vmem>>, vector<1x16x256xf32>
    %5 = vector.shape_cast %4 : vector<1x16x256xf32> to vector<16x256xf32>
    %6 = vector.shape_cast %3 : vector<16x256xf32> to vector<1x16x256xf32>
    tpu.vector_store %arg4[%c0_4, %c0_5, %c0_6], %6 {strides = array<i32>} : memref<1x16x256xf32, #tpu.memory_space<vmem>>, vector<1x16x256xf32>,
    return
  }
  func.func @transform_0(%arg0: i32, %arg1: i32) -> (i32, i32, i32) {
    %c0_i32 = arith.constant 0 : i32
    %c0_i32_0 = arith.constant 0 : i32
    return %arg0, %c0_i32, %arg1 : i32, i32, i32
  }
  func.func @transform_1(%arg0: i32, %arg1: i32) -> (i32, i32) {
    %c0_i32 = arith.constant 0 : i32
    %c0_i32_0 = arith.constant 0 : i32
    %c0_i32_1 = arith.constant 0 : i32
    return %c0_i32, %c0_i32_0 : i32, i32
  }
  func.func @transform_2(%arg0: i32, %arg1: i32) -> (i32, i32, i32) {
    %c0_i32 = arith.constant 0 : i32
    %c0_i32_0 = arith.constant 0 : i32
    return %arg0, %c0_i32, %arg1 : i32, i32, i32
  }
}

</mosaic_0001>

<llo_original>
// kernel: tpu_custom_call.1
$region0: #{tpu_custom_call.1}
  #allocation0 [shape = 'u32[]', space=smem, size = 0x4, offset = 0x4, fixed_abs, tag = 'smem constant byte address 0x4 - core index']
  #allocation1 [shape = 'u32[72,128]{1,0:T(1,128)}', space=vmem, size = 0x9000, scoped, tag = 'internal scratch']
  %s0 = inlined_call_operand.vmem [shape: f32[1,65,384], index: 0, kind: input, shape index: {}]
  %s1 = inlined_call_operand.vmem [shape: f32[16,65], index: 1, kind: input, shape index: {}]
  %s2 = inlined_call_operand.hbm [shape: f32[1,16,384], index: 2, kind: output, shape index: {}]
  %s3 = sld [smem:[#allocation0]]
  $region107: #{tpu_custom_call.1} parent=0
    _
  %s5 = ssub.s32 1, %s3
  %s6 = scalar_select 0, %s5, %s3
  $region1: #{tpu_custom_call.1} parent=0
    #allocation2 [shape = 'u8[147456]{0}', space=vmem, size = 0x24000, scoped, tag = 'input window, operand 0']
    #allocation3 [shape = 'u8[32768]{0}', space=vmem, size = 0x8000, scoped, tag = 'output window, operand 0']
    #allocation4 [shape = 's32[2]{0}', space=sflag, size = 0x8, scoped, tag = 'scoped memory for tpu_custom_call.1']
    %7 = vsyncpa [#allocation4], 0
    %s8 = scalar_lea.sflag [#allocation4], 1
    %9 = vsyncpa %s8, 0
    loop: start=0, step=1, limit=4
    $region2: #{tpu_custom_call.1} parent=1 // loop_pre_header
      _
    $region3: #{tpu_custom_call.1} parent=1 // loop_header
      %s11 = sphi 0, %s15
      %p12 = scmp.ge.s32.totalorder %s11, 4
      %s18 = sphi 0, %s30
      %s19 = sphi 0, %s26
      %s20 = sphi 0, %s18
      %s21 = sphi 0, %s19
      %s22 = sphi 0, %s20
      %s23 = sphi 0, %s21
      %s35 = sphi 0, %s37
      %s38 = sphi 0, %s35
      %s39 = sphi 0, %s38
      %s55 = sphi 0, %s39
      %s59 = sphi 0, %s59
      %s61 = sphi 0, %s59
      %s62 = sphi 0, %s61
      %s76 = sphi 0, %s62
      %s84 = sphi 0, %s86
      %s87 = sphi 0, %s84
      %s88 = sphi 0, %s87
      %s104 = sphi 0, %s88
    $region4: #{tpu_custom_call.1} parent=1 // loop_header_branch
      %14 = sbr.rel (%p12) target = $region8
    $region5: #{tpu_custom_call.1} parent=1 // loop_body
      %s16 = ssub.s32 %s11, 1
      %s17 = ssub.s32 %s11, 2
      %s24 = sadd.s32 1, %s19
      %p25 = scmp.ge.s32.totalorder %s24, 2
      %s26 = scalar_select %p25, 0, %s24
      %s27 = sadd.s32 1, %s18
      %s28 = scalar_select %p25, %s27, %s18
      %p29 = scmp.ge.s32.totalorder %s28, 1
      %s30 = scalar_select %p29, 0, %s28
      %s31 = ssub.s32 %s18, %s30
      %s32 = ssub.s32 %s19, %s26
      %s33 = sor.u32 %s31, %s32
      %p34 = scmp.eq.s32.totalorder %s33, 0
      %s36 = sadd.s32 %s35, 1
      %s37 = scalar_select %p34, %s35, %s36
      %p40 = pneg %p34
      %p41 = scmp.eq.s32.totalorder %s11, 1
      %p42 = por %p40, %p41
      %p43 = scmp.ne.s32.totalorder %s35, %s38
      %p44 = scmp.eq.s32.totalorder %s11, 0
      %p45 = por %p43, %p44
      %p46 = scmp.ne.s32.totalorder %s35, %s38
      %p47 = scmp.eq.s32.totalorder %s16, 1
      %p48 = por %p46, %p47
      %p49 = scmp.ne.s32.totalorder %s38, %s39
      %p50 = scmp.eq.s32.totalorder %s16, 0
      %p51 = por %p49, %p50
      %p52 = scmp.ne.s32.totalorder %s38, %s39
      %p53 = scmp.eq.s32.totalorder %s17, 1
      %p54 = por %p52, %p53
      %p56 = scmp.ne.s32.totalorder %s39, %s55
      %p57 = scmp.eq.s32.totalorder %s17, 0
      %p58 = por %p56, %p57
      %s60 = sadd.s32 %s59, 1
      %p63 = scmp.eq.s32.totalorder %s11, 1
      %p64 = scmp.ne.s32.totalorder %s59, %s61
      %p65 = scmp.eq.s32.totalorder %s11, 0
      %p66 = por %p64, %p65
      %p67 = scmp.ne.s32.totalorder %s59, %s61
      %p68 = scmp.eq.s32.totalorder %s16, 1
      %p69 = por %p67, %p68
      %p70 = scmp.ne.s32.totalorder %s61, %s62
      %p71 = scmp.eq.s32.totalorder %s16, 0
      %p72 = por %p70, %p71
      %p73 = scmp.ne.s32.totalorder %s61, %s62
      %p74 = scmp.eq.s32.totalorder %s17, 1
      %p75 = por %p73, %p74
      %p77 = scmp.ne.s32.totalorder %s62, %s76
      %p78 = scmp.eq.s32.totalorder %s17, 0
      %p79 = por %p77, %p78
      %s80 = ssub.s32 %s18, %s30
      %s81 = ssub.s32 %s19, %s26
      %s82 = sor.u32 %s80, %s81
      %p83 = scmp.eq.s32.totalorder %s82, 0
      %s85 = sadd.s32 %s84, 1
      %s86 = scalar_select %p83, %s84, %s85
      %p89 = pneg %p83
      %p90 = scmp.eq.s32.totalorder %s11, 1
      %p91 = por %p89, %p90
      %p92 = scmp.ne.s32.totalorder %s84, %s87
      %p93 = scmp.eq.s32.totalorder %s11, 0
      %p94 = por %p92, %p93
      %p95 = scmp.ne.s32.totalorder %s84, %s87
      %p96 = scmp.eq.s32.totalorder %s16, 1
      %p97 = por %p95, %p96
      %p98 = scmp.ne.s32.totalorder %s87, %s88
      %p99 = scmp.eq.s32.totalorder %s16, 0
      %p100 = por %p98, %p99
      %p101 = scmp.ne.s32.totalorder %s87, %s88
      %p102 = scmp.eq.s32.totalorder %s17, 1
      %p103 = por %p101, %p102
      %p105 = scmp.ne.s32.totalorder %s88, %s104
      %p106 = scmp.eq.s32.totalorder %s17, 0
      %p107 = por %p105, %p106
      %p108 = scmp.le.s32.totalorder 1, %s11
      %p109 = scmp.lt.s32.totalorder %s11, 3
      %p110 = pnand %p108, %p109
      %p111 = pneg %p110
      // Predicated region
      $region9: #{tpu_custom_call.1} parent=5 // pred_check
        _
      $region10: #{tpu_custom_call.1} parent=5 // pred_check_branch
        %113 = sbr.rel (%p110) target = $region12
      $region11: #{tpu_custom_call.1} parent=5 // pred_region
        %s114 = ssub.s32 %s11, 1
        // Predicated region
        $region13: #{tpu_custom_call.1} parent=11 // pred_check
          %p115 = pneg %p72
        $region14: #{tpu_custom_call.1} parent=11 // pred_check_branch
          %117 = sbr.rel (%p115) target = $region16
        $region15: #{tpu_custom_call.1} parent=11 // pred_region
          _
        $region16: #{tpu_custom_call.1} parent=11 // pred_fallthru
          _
      $region12: #{tpu_custom_call.1} parent=5 // pred_fallthru
        _
      %p118 = scmp.lt.s32.totalorder %s11, 2
      // Predicated region
      $region17: #{tpu_custom_call.1} parent=5 // pred_check
        %p119 = pneg %p118
      $region18: #{tpu_custom_call.1} parent=5 // pred_check_branch
        %121 = sbr.rel (%p119) target = $region20
      $region19: #{tpu_custom_call.1} parent=5 // pred_region
        // Predicated region
        $region21: #{tpu_custom_call.1} parent=19 // pred_check
          %p122 = pneg %p45
        $region22: #{tpu_custom_call.1} parent=19 // pred_check_branch
          %124 = sbr.rel (%p122) target = $region24
        $region23: #{tpu_custom_call.1} parent=19 // pred_region
          %s125 = sand.u32 %s35, 1
          %s126 = sand.u32 %s35, 1
          %s127 = smul.addr %s126, 144
          %s128 = scalar_lea.vmem [#allocation2], %s127
          %s129 = smul.u32 2, %s19
          %s130 = ssub.s32 3, %s129
          %p131 = scmp.lt.s32.totalorder %s130, 2
          %s132 = scalar_select %p131, %s130, 2
          %s133 = smul.u32 72, %s132
          %p134 = scmp.ne.s32.totalorder 0, %s133
          %s135 = smul.addr %s18, 27
          %s136 = sadd.s32 %s129, %s135
          %s137 = smul.addr %s136, 8
          %s138 = scalar_lea.vmem %s0, %s137
          %s139 = smul.u32 %s132, 8
          // Predicated region
          $region25: #{tpu_custom_call.1} parent=23 // pred_check
            %p140 = pneg %p134
          $region26: #{tpu_custom_call.1} parent=23 // pred_check_branch
            %142 = sbr.rel (%p140) target = $region28
          $region27: #{tpu_custom_call.1} parent=23 // pred_region
            %p143 = scmp.lt.u32.totalorder %s139, 8
            %p144 = pneg %p143
            // Predicated region
            $region29: #{tpu_custom_call.1} parent=27 // pred_check
              _
            $region30: #{tpu_custom_call.1} parent=27 // pred_check_branch
              %146 = sbr.rel (%p143) target = $region32
            $region31: #{tpu_custom_call.1} parent=27 // pred_region
              %s178 = sand.u32 %s139, 7
              %p179 = scmp.eq.s32.totalorder %s178, 0
              // Predicated region
              $region44: #{tpu_custom_call.1} parent=31 // pred_check
                %p180 = pneg %p179
              $region45: #{tpu_custom_call.1} parent=31 // pred_check_branch
                %182 = sbr.rel (%p180) target = $region47
              $region46: #{tpu_custom_call.1} parent=31 // pred_region
                %s183 = sshrl.u32 %s139, 3
                %s184 = sshrl.u32 %s183, 2
                // While loop
                $region48: #{tpu_custom_call.1} parent=46 // loop_pre_header
                  _
                $region49: #{tpu_custom_call.1} parent=46 // loop_header
                  %s186 = sphi 0, %s188
                  %p187 = scmp.ge.s32.totalorder %s186, %s184
                  %s191 = sphi 0, %s268
                  %s192 = sphi %s138, %s271
                  %s193 = sphi %s128, %s272
                $region50: #{tpu_custom_call.1} parent=46 // loop_header_branch
                  %190 = sbr.rel (%p187) target = $region54
                $region51: #{tpu_custom_call.1} parent=46 // loop_body
                  %v194 = vld [vmem:[%s192] sm:$0xff]
                  %195 = vst [vmem:[%s193] sm:$0xff] %v194
                  %v196 = vld [vmem:[%s192 + $0x8] sm:$0xff]
                  %197 = vst [vmem:[%s193 + $0x8] sm:$0xff] %v196
                  %v198 = vld [vmem:[%s192 + $0x10] sm:$0xff]
                  %199 = vst [vmem:[%s193 + $0x10] sm:$0xff] %v198
                  %v200 = vld [vmem:[%s192 + $0x18] sm:$0xff]
                  %201 = vst [vmem:[%s193 + $0x18] sm:$0xff] %v200
                  %v202 = vld [vmem:[%s192 + $0x18] sm:$0xff]
                  %203 = vst [vmem:[%s193 + $0x10] sm:$0xff] %v202
                  %v204 = vld [vmem:[%s192 + $0x20] sm:$0xff]
                  %205 = vst [vmem:[%s193 + $0x18] sm:$0xff] %v204
                  %v206 = vld [vmem:[%s192 + $0x28] sm:$0xff]
                  %207 = vst [vmem:[%s193 + $0x20] sm:$0xff] %v206
                  %v208 = vld [vmem:[%s192 + $0x30] sm:$0xff]
                  %209 = vst [vmem:[%s193 + $0x28] sm:$0xff] %v208
                  %v210 = vld [vmem:[%s192 + $0x30] sm:$0xff]
                  %211 = vst [vmem:[%s193 + $0x20] sm:$0xff] %v210
                  %v212 = vld [vmem:[%s192 + $0x38] sm:$0xff]
                  %213 = vst [vmem:[%s193 + $0x28] sm:$0xff] %v212
                  %v214 = vld [vmem:[%s192 + $0x40] sm:$0xff]
                  %215 = vst [vmem:[%s193 + $0x30] sm:$0xff] %v214
                  %v216 = vld [vmem:[%s192 + $0x48] sm:$0xff]
                  %217 = vst [vmem:[%s193 + $0x38] sm:$0xff] %v216
                  %v218 = vld [vmem:[%s192 + $0x48] sm:$0xff]
                  %219 = vst [vmem:[%s193 + $0x30] sm:$0xff] %v218
                  %v220 = vld [vmem:[%s192 + $0x50] sm:$0xff]
                  %221 = vst [vmem:[%s193 + $0x38] sm:$0xff] %v220
                  %v222 = vld [vmem:[%s192 + $0x58] sm:$0xff]
                  %223 = vst [vmem:[%s193 + $0x40] sm:$0xff] %v222
                  %v224 = vld [vmem:[%s192 + $0x60] sm:$0xff]
                  %225 = vst [vmem:[%s193 + $0x48] sm:$0xff] %v224
                  %v226 = vld [vmem:[%s192 + $0x60] sm:$0xff]
                  %227 = vst [vmem:[%s193 + $0x40] sm:$0xff] %v226
                  %v228 = vld [vmem:[%s192 + $0x68] sm:$0xff]
                  %229 = vst [vmem:[%s193 + $0x48] sm:$0xff] %v228
                  %v230 = vld [vmem:[%s192 + $0x70] sm:$0xff]
                  %231 = vst [vmem:[%s193 + $0x50] sm:$0xff] %v230
                  %v232 = vld [vmem:[%s192 + $0x78] sm:$0xff]
                  %233 = vst [vmem:[%s193 + $0x58] sm:$0xff] %v232
                  %v234 = vld [vmem:[%s192 + $0x78] sm:$0xff]
                  %235 = vst [vmem:[%s193 + $0x50] sm:$0xff] %v234
                  %v236 = vld [vmem:[%s192 + $0x80] sm:$0xff]
                  %237 = vst [vmem:[%s193 + $0x58] sm:$0xff] %v236
                  %v238 = vld [vmem:[%s192 + $0x88] sm:$0xff]
                  %239 = vst [vmem:[%s193 + $0x60] sm:$0xff] %v238
                  %v240 = vld [vmem:[%s192 + $0x90] sm:$0xff]
                  %241 = vst [vmem:[%s193 + $0x68] sm:$0xff] %v240
                  %v242 = vld [vmem:[%s192 + $0x90] sm:$0xff]
                  %243 = vst [vmem:[%s193 + $0x60] sm:$0xff] %v242
                  %v244 = vld [vmem:[%s192 + $0x98] sm:$0xff]
                  %245 = vst [vmem:[%s193 + $0x68] sm:$0xff] %v244
                  %v246 = vld [vmem:[%s192 + $0xa0] sm:$0xff]
                  %247 = vst [vmem:[%s193 + $0x70] sm:$0xff] %v246
                  %v248 = vld [vmem:[%s192 + $0xa8] sm:$0xff]
                  %249 = vst [vmem:[%s193 + $0x78] sm:$0xff] %v248
                  %v250 = vld [vmem:[%s192 + $0xa8] sm:$0xff]
                  %251 = vst [vmem:[%s193 + $0x70] sm:$0xff] %v250
                  %v252 = vld [vmem:[%s192 + $0xb0] sm:$0xff]
                  %253 = vst [vmem:[%s193 + $0x78] sm:$0xff] %v252
                  %v254 = vld [vmem:[%s192 + $0xb8] sm:$0xff]
                  %255 = vst [vmem:[%s193 + $0x80] sm:$0xff] %v254
                  %v256 = vld [vmem:[%s192 + $0xc0] sm:$0xff]
                  %257 = vst [vmem:[%s193 + $0x88] sm:$0xff] %v256
                  %v258 = vld [vmem:[%s192 + $0xc0] sm:$0xff]
                  %259 = vst [vmem:[%s193 + $0x80] sm:$0xff] %v258
                  %v260 = vld [vmem:[%s192 + $0xc8] sm:$0xff]
                  %261 = vst [vmem:[%s193 + $0x88] sm:$0xff] %v260
                  %v262 = vld [vmem:[%s192 + $0xd0] sm:$0xff]
                  %263 = vst [vmem:[%s193 + $0x90] sm:$0xff] %v262
                  %v264 = vld [vmem:[%s192 + $0xd8] sm:$0xff]
                  %265 = vst [vmem:[%s193 + $0x98] sm:$0xff] %v264
                  %s266 = sadd.s32 1, %s191
                  %p267 = scmp.ge.s32.totalorder %s266, %s184
                  %s268 = scalar_select %p267, 0, %s266
                  %s269 = smul.u32 %s268, 32
                  %s270 = smul.u32 %s268, 32
                  %s271 = scalar_lea.vmem %s138, %s269
                  %s272 = scalar_lea.vmem %s128, %s270 [#allocation2]
                $region52: #{tpu_custom_call.1} parent=46 // loop_footer
                  %s188 = sadd.s32 %s186, 1
                $region53: #{tpu_custom_call.1} parent=46 // loop_footer_branch
                  %185 = sbr.rel target = $region49
                $region54: #{tpu_custom_call.1} parent=46 // loop_exit
                  _
                %s273 = sshrl.u32 %s183, 2
                %s274 = sand.u32 %s183, 3
                %s275 = smul.u32 %s273, 4
                %s276 = smul.u32 8, %s275
                %s277 = scalar_lea.vmem %s138, %s276
                %s278 = smul.u32 8, %s275
                %s279 = scalar_lea.vmem %s128, %s278 [#allocation2]
                // While loop
                $region55: #{tpu_custom_call.1} parent=46 // loop_pre_header
                  _
                $region56: #{tpu_custom_call.1} parent=46 // loop_header
                  %s281 = sphi 0, %s283
                  %p282 = scmp.ge.s32.totalorder %s281, %s274
                  %s286 = sphi 0, %s309
                  %s287 = sphi %s277, %s312
                  %s288 = sphi %s279, %s313
                $region57: #{tpu_custom_call.1} parent=46 // loop_header_branch
                  %285 = sbr.rel (%p282) target = $region61
                $region58: #{tpu_custom_call.1} parent=46 // loop_body
                  %v289 = vld [vmem:[%s287] sm:$0xff]
                  %290 = vst [vmem:[%s288] sm:$0xff] %v289
                  %v291 = vld [vmem:[%s287 + $0x18] sm:$0xff]
                  %292 = vst [vmem:[%s288 + $0x10] sm:$0xff] %v291
                  %v293 = vld [vmem:[%s287 + $0x30] sm:$0xff]
                  %294 = vst [vmem:[%s288 + $0x20] sm:$0xff] %v293
                  %v295 = vld [vmem:[%s287 + $0x48] sm:$0xff]
                  %296 = vst [vmem:[%s288 + $0x30] sm:$0xff] %v295
                  %v297 = vld [vmem:[%s287 + $0x60] sm:$0xff]
                  %298 = vst [vmem:[%s288 + $0x40] sm:$0xff] %v297
                  %v299 = vld [vmem:[%s287 + $0x78] sm:$0xff]
                  %300 = vst [vmem:[%s288 + $0x50] sm:$0xff] %v299
                  %v301 = vld [vmem:[%s287 + $0x90] sm:$0xff]
                  %302 = vst [vmem:[%s288 + $0x60] sm:$0xff] %v301
                  %v303 = vld [vmem:[%s287 + $0xa8] sm:$0xff]
                  %304 = vst [vmem:[%s288 + $0x70] sm:$0xff] %v303
                  %v305 = vld [vmem:[%s287 + $0xc0] sm:$0xff]
                  %306 = vst [vmem:[%s288 + $0x80] sm:$0xff] %v305
                  %s307 = sadd.s32 1, %s286
                  %p308 = scmp.ge.s32.totalorder %s307, %s274
                  %s309 = scalar_select %p308, 0, %s307
                  %s310 = smul.u32 %s309, 8
                  %s311 = smul.u32 %s309, 8
                  %s312 = scalar_lea.vmem %s277, %s310
                  %s313 = scalar_lea.vmem %s279, %s311 [#allocation2]
                $region59: #{tpu_custom_call.1} parent=46 // loop_footer
                  %s283 = sadd.s32 %s281, 1
                $region60: #{tpu_custom_call.1} parent=46 // loop_footer_branch
                  %280 = sbr.rel target = $region56
                $region61: #{tpu_custom_call.1} parent=46 // loop_exit
                  _
              $region47: #{tpu_custom_call.1} parent=31 // pred_fallthru
                _
              %p314 = pneg %p179
              // Predicated region
              $region62: #{tpu_custom_call.1} parent=31 // pred_check
                _
              $region63: #{tpu_custom_call.1} parent=31 // pred_check_branch
                %316 = sbr.rel (%p179) target = $region65
              $region64: #{tpu_custom_call.1} parent=31 // pred_region
                %s317 = sand.u32 %s139, 7
                %s318 = ssub.s32 %s139, %s317
                %s319 = scalar_lea.vmem %s138, %s318
                %s320 = ssub.s32 %s139, %s317
                %s321 = scalar_lea.vmem %s128, %s320 [#allocation2]
                %s322 = sshrl.u32 %s139, 3
                %s323 = sshrl.u32 %s322, 2
                // While loop
                $region66: #{tpu_custom_call.1} parent=64 // loop_pre_header
                  _
                $region67: #{tpu_custom_call.1} parent=64 // loop_header
                  %s325 = sphi 0, %s327
                  %p326 = scmp.ge.s32.totalorder %s325, %s323
                  %s330 = sphi 0, %s407
                  %s331 = sphi %s138, %s410
                  %s332 = sphi %s128, %s411
                $region68: #{tpu_custom_call.1} parent=64 // loop_header_branch
                  %329 = sbr.rel (%p326) target = $region72
                $region69: #{tpu_custom_call.1} parent=64 // loop_body
                  %v333 = vld [vmem:[%s331] sm:$0xff]
                  %334 = vst [vmem:[%s332] sm:$0xff] %v333
                  %v335 = vld [vmem:[%s331 + $0x8] sm:$0xff]
                  %336 = vst [vmem:[%s332 + $0x8] sm:$0xff] %v335
                  %v337 = vld [vmem:[%s331 + $0x10] sm:$0xff]
                  %338 = vst [vmem:[%s332 + $0x10] sm:$0xff] %v337
                  %v339 = vld [vmem:[%s331 + $0x18] sm:$0xff]
                  %340 = vst [vmem:[%s332 + $0x18] sm:$0xff] %v339
                  %v341 = vld [vmem:[%s331 + $0x18] sm:$0xff]
                  %342 = vst [vmem:[%s332 + $0x10] sm:$0xff] %v341
                  %v343 = vld [vmem:[%s331 + $0x20] sm:$0xff]
                  %344 = vst [vmem:[%s332 + $0x18] sm:$0xff] %v343
                  %v345 = vld [vmem:[%s331 + $0x28] sm:$0xff]
                  %346 = vst [vmem:[%s332 + $0x20] sm:$0xff] %v345
                  %v347 = vld [vmem:[%s331 + $0x30] sm:$0xff]
                  %348 = vst [vmem:[%s332 + $0x28] sm:$0xff] %v347
                  %v349 = vld [vmem:[%s331 + $0x30] sm:$0xff]
                  %350 = vst [vmem:[%s332 + $0x20] sm:$0xff] %v349
                  %v351 = vld [vmem:[%s331 + $0x38] sm:$0xff]
                  %352 = vst [vmem:[%s332 + $0x28] sm:$0xff] %v351
                  %v353 = vld [vmem:[%s331 + $0x40] sm:$0xff]
                  %354 = vst [vmem:[%s332 + $0x30] sm:$0xff] %v353
                  %v355 = vld [vmem:[%s331 + $0x48] sm:$0xff]
                  %356 = vst [vmem:[%s332 + $0x38] sm:$0xff] %v355
                  %v357 = vld [vmem:[%s331 + $0x48] sm:$0xff]
                  %358 = vst [vmem:[%s332 + $0x30] sm:$0xff] %v357
                  %v359 = vld [vmem:[%s331 + $0x50] sm:$0xff]
                  %360 = vst [vmem:[%s332 + $0x38] sm:$0xff] %v359
                  %v361 = vld [vmem:[%s331 + $0x58] sm:$0xff]
                  %362 = vst [vmem:[%s332 + $0x40] sm:$0xff] %v361
                  %v363 = vld [vmem:[%s331 + $0x60] sm:$0xff]
                  %364 = vst [vmem:[%s332 + $0x48] sm:$0xff] %v363
                  %v365 = vld [vmem:[%s331 + $0x60] sm:$0xff]
                  %366 = vst [vmem:[%s332 + $0x40] sm:$0xff] %v365
                  %v367 = vld [vmem:[%s331 + $0x68] sm:$0xff]
                  %368 = vst [vmem:[%s332 + $0x48] sm:$0xff] %v367
                  %v369 = vld [vmem:[%s331 + $0x70] sm:$0xff]
                  %370 = vst [vmem:[%s332 + $0x50] sm:$0xff] %v369
                  %v371 = vld [vmem:[%s331 + $0x78] sm:$0xff]
                  %372 = vst [vmem:[%s332 + $0x58] sm:$0xff] %v371
                  %v373 = vld [vmem:[%s331 + $0x78] sm:$0xff]
                  %374 = vst [vmem:[%s332 + $0x50] sm:$0xff] %v373
                  %v375 = vld [vmem:[%s331 + $0x80] sm:$0xff]
                  %376 = vst [vmem:[%s332 + $0x58] sm:$0xff] %v375
                  %v377 = vld [vmem:[%s331 + $0x88] sm:$0xff]
                  %378 = vst [vmem:[%s332 + $0x60] sm:$0xff] %v377
                  %v379 = vld [vmem:[%s331 + $0x90] sm:$0xff]
                  %380 = vst [vmem:[%s332 + $0x68] sm:$0xff] %v379
                  %v381 = vld [vmem:[%s331 + $0x90] sm:$0xff]
                  %382 = vst [vmem:[%s332 + $0x60] sm:$0xff] %v381
                  %v383 = vld [vmem:[%s331 + $0x98] sm:$0xff]
                  %384 = vst [vmem:[%s332 + $0x68] sm:$0xff] %v383
                  %v385 = vld [vmem:[%s331 + $0xa0] sm:$0xff]
                  %386 = vst [vmem:[%s332 + $0x70] sm:$0xff] %v385
                  %v387 = vld [vmem:[%s331 + $0xa8] sm:$0xff]
                  %388 = vst [vmem:[%s332 + $0x78] sm:$0xff] %v387
                  %v389 = vld [vmem:[%s331 + $0xa8] sm:$0xff]
                  %390 = vst [vmem:[%s332 + $0x70] sm:$0xff] %v389
                  %v391 = vld [vmem:[%s331 + $0xb0] sm:$0xff]
                  %392 = vst [vmem:[%s332 + $0x78] sm:$0xff] %v391
                  %v393 = vld [vmem:[%s331 + $0xb8] sm:$0xff]
                  %394 = vst [vmem:[%s332 + $0x80] sm:$0xff] %v393
                  %v395 = vld [vmem:[%s331 + $0xc0] sm:$0xff]
                  %396 = vst [vmem:[%s332 + $0x88] sm:$0xff] %v395
                  %v397 = vld [vmem:[%s331 + $0xc0] sm:$0xff]
                  %398 = vst [vmem:[%s332 + $0x80] sm:$0xff] %v397
                  %v399 = vld [vmem:[%s331 + $0xc8] sm:$0xff]
                  %400 = vst [vmem:[%s332 + $0x88] sm:$0xff] %v399
                  %v401 = vld [vmem:[%s331 + $0xd0] sm:$0xff]
                  %402 = vst [vmem:[%s332 + $0x90] sm:$0xff] %v401
                  %v403 = vld [vmem:[%s331 + $0xd8] sm:$0xff]
                  %404 = vst [vmem:[%s332 + $0x98] sm:$0xff] %v403
                  %s405 = sadd.s32 1, %s330
                  %p406 = scmp.ge.s32.totalorder %s405, %s323
                  %s407 = scalar_select %p406, 0, %s405
                  %s408 = smul.u32 %s407, 32
                  %s409 = smul.u32 %s407, 32
                  %s410 = scalar_lea.vmem %s138, %s408
                  %s411 = scalar_lea.vmem %s128, %s409 [#allocation2]
                $region70: #{tpu_custom_call.1} parent=64 // loop_footer
                  %s327 = sadd.s32 %s325, 1
                $region71: #{tpu_custom_call.1} parent=64 // loop_footer_branch
                  %324 = sbr.rel target = $region67
                $region72: #{tpu_custom_call.1} parent=64 // loop_exit
                  _
                %s412 = sshrl.u32 %s322, 2
                %s413 = sand.u32 %s322, 3
                %s414 = smul.u32 %s412, 4
                %s415 = smul.u32 8, %s414
                %s416 = scalar_lea.vmem %s138, %s415
                %s417 = smul.u32 8, %s414
                %s418 = scalar_lea.vmem %s128, %s417 [#allocation2]
                // While loop
                $region73: #{tpu_custom_call.1} parent=64 // loop_pre_header
                  _
                $region74: #{tpu_custom_call.1} parent=64 // loop_header
                  %s420 = sphi 0, %s422
                  %p421 = scmp.ge.s32.totalorder %s420, %s413
                  %s425 = sphi 0, %s448
                  %s426 = sphi %s416, %s451
                  %s427 = sphi %s418, %s452
                $region75: #{tpu_custom_call.1} parent=64 // loop_header_branch
                  %424 = sbr.rel (%p421) target = $region79
                $region76: #{tpu_custom_call.1} parent=64 // loop_body
                  %v428 = vld [vmem:[%s426] sm:$0xff]
                  %429 = vst [vmem:[%s427] sm:$0xff] %v428
                  %v430 = vld [vmem:[%s426 + $0x18] sm:$0xff]
                  %431 = vst [vmem:[%s427 + $0x10] sm:$0xff] %v430
                  %v432 = vld [vmem:[%s426 + $0x30] sm:$0xff]
                  %433 = vst [vmem:[%s427 + $0x20] sm:$0xff] %v432
                  %v434 = vld [vmem:[%s426 + $0x48] sm:$0xff]
                  %435 = vst [vmem:[%s427 + $0x30] sm:$0xff] %v434
                  %v436 = vld [vmem:[%s426 + $0x60] sm:$0xff]
                  %437 = vst [vmem:[%s427 + $0x40] sm:$0xff] %v436
                  %v438 = vld [vmem:[%s426 + $0x78] sm:$0xff]
                  %439 = vst [vmem:[%s427 + $0x50] sm:$0xff] %v438
                  %v440 = vld [vmem:[%s426 + $0x90] sm:$0xff]
                  %441 = vst [vmem:[%s427 + $0x60] sm:$0xff] %v440
                  %v442 = vld [vmem:[%s426 + $0xa8] sm:$0xff]
                  %443 = vst [vmem:[%s427 + $0x70] sm:$0xff] %v442
                  %v444 = vld [vmem:[%s426 + $0xc0] sm:$0xff]
                  %445 = vst [vmem:[%s427 + $0x80] sm:$0xff] %v444
                  %s446 = sadd.s32 1, %s425
                  %p447 = scmp.ge.s32.totalorder %s446, %s413
                  %s448 = scalar_select %p447, 0, %s446
                  %s449 = smul.u32 %s448, 8
                  %s450 = smul.u32 %s448, 8
                  %s451 = scalar_lea.vmem %s416, %s449
                  %s452 = scalar_lea.vmem %s418, %s450 [#allocation2]
                $region77: #{tpu_custom_call.1} parent=64 // loop_footer
                  %s422 = sadd.s32 %s420, 1
                $region78: #{tpu_custom_call.1} parent=64 // loop_footer_branch
                  %419 = sbr.rel target = $region74
                $region79: #{tpu_custom_call.1} parent=64 // loop_exit
                  _
                %s453 = sshll.u32 1, %s317
                %s454 = ssub.s32 %s453, 1
                loop: start=0, step=1, limit=1
                $region80: #{tpu_custom_call.1} parent=64 // loop_pre_header
                  _
                $region81: #{tpu_custom_call.1} parent=64 // loop_header
                  %s456 = sphi 0, %s460
                  %p457 = scmp.ge.s32.totalorder %s456, 1
                  %s461 = sphi %s319, %s319
                  %s462 = sphi %s321, %s321
                $region82: #{tpu_custom_call.1} parent=64 // loop_header_branch
                  %459 = sbr.rel (%p457) target = $region86
                $region83: #{tpu_custom_call.1} parent=64 // loop_body
                  %v463 = vld [vmem:[%s461] sm:%s454]
                  %464 = vst [vmem:[%s462] sm:%s454] %v463
                  %v465 = vld [vmem:[%s461 + $0x18] sm:%s454]
                  %466 = vst [vmem:[%s462 + $0x10] sm:%s454] %v465
                  %v467 = vld [vmem:[%s461 + $0x30] sm:%s454]
                  %468 = vst [vmem:[%s462 + $0x20] sm:%s454] %v467
                  %v469 = vld [vmem:[%s461 + $0x48] sm:%s454]
                  %470 = vst [vmem:[%s462 + $0x30] sm:%s454] %v469
                  %v471 = vld [vmem:[%s461 + $0x60] sm:%s454]
                  %472 = vst [vmem:[%s462 + $0x40] sm:%s454] %v471
                  %v473 = vld [vmem:[%s461 + $0x78] sm:%s454]
                  %474 = vst [vmem:[%s462 + $0x50] sm:%s454] %v473
                  %v475 = vld [vmem:[%s461 + $0x90] sm:%s454]
                  %476 = vst [vmem:[%s462 + $0x60] sm:%s454] %v475
                  %v477 = vld [vmem:[%s461 + $0xa8] sm:%s454]
                  %478 = vst [vmem:[%s462 + $0x70] sm:%s454] %v477
                  %v479 = vld [vmem:[%s461 + $0xc0] sm:%s454]
                  %480 = vst [vmem:[%s462 + $0x80] sm:%s454] %v479
                $region84: #{tpu_custom_call.1} parent=64 // loop_footer
                  %s460 = sadd.s32 1, %s456
                $region85: #{tpu_custom_call.1} parent=64 // loop_footer_branch
                  %455 = sbr.rel target = $region81
                $region86: #{tpu_custom_call.1} parent=64 // loop_exit
                  _
              $region65: #{tpu_custom_call.1} parent=31 // pred_fallthru
                _
            $region32: #{tpu_custom_call.1} parent=27 // pred_fallthru
              _
            // Predicated region
            $region33: #{tpu_custom_call.1} parent=27 // pred_check
              %p147 = pneg %p143
            $region34: #{tpu_custom_call.1} parent=27 // pred_check_branch
              %149 = sbr.rel (%p147) target = $region36
            $region35: #{tpu_custom_call.1} parent=27 // pred_region
              %s150 = sshll.u32 1, %s139
              %s151 = ssub.s32 %s150, 1
              loop: start=0, step=1, limit=1
              $region37: #{tpu_custom_call.1} parent=35 // loop_pre_header
                _
              $region38: #{tpu_custom_call.1} parent=35 // loop_header
                %s153 = sphi 0, %s157
                %p154 = scmp.ge.s32.totalorder %s153, 1
                %s158 = sphi %s138, %s138
                %s159 = sphi %s128, %s128
              $region39: #{tpu_custom_call.1} parent=35 // loop_header_branch
                %156 = sbr.rel (%p154) target = $region43
              $region40: #{tpu_custom_call.1} parent=35 // loop_body
                %v160 = vld [vmem:[%s158] sm:%s151]
                %161 = vst [vmem:[%s159] sm:%s151] %v160
                %v162 = vld [vmem:[%s158 + $0x18] sm:%s151]
                %163 = vst [vmem:[%s159 + $0x10] sm:%s151] %v162
                %v164 = vld [vmem:[%s158 + $0x30] sm:%s151]
                %165 = vst [vmem:[%s159 + $0x20] sm:%s151] %v164
                %v166 = vld [vmem:[%s158 + $0x48] sm:%s151]
                %167 = vst [vmem:[%s159 + $0x30] sm:%s151] %v166
                %v168 = vld [vmem:[%s158 + $0x60] sm:%s151]
                %169 = vst [vmem:[%s159 + $0x40] sm:%s151] %v168
                %v170 = vld [vmem:[%s158 + $0x78] sm:%s151]
                %171 = vst [vmem:[%s159 + $0x50] sm:%s151] %v170
                %v172 = vld [vmem:[%s158 + $0x90] sm:%s151]
                %173 = vst [vmem:[%s159 + $0x60] sm:%s151] %v172
                %v174 = vld [vmem:[%s158 + $0xa8] sm:%s151]
                %175 = vst [vmem:[%s159 + $0x70] sm:%s151] %v174
                %v176 = vld [vmem:[%s158 + $0xc0] sm:%s151]
                %177 = vst [vmem:[%s159 + $0x80] sm:%s151] %v176
              $region41: #{tpu_custom_call.1} parent=35 // loop_footer
                %s157 = sadd.s32 1, %s153
              $region42: #{tpu_custom_call.1} parent=35 // loop_footer_branch
                %152 = sbr.rel target = $region38
              $region43: #{tpu_custom_call.1} parent=35 // loop_exit
                _
            $region36: #{tpu_custom_call.1} parent=27 // pred_fallthru
              _
          $region28: #{tpu_custom_call.1} parent=23 // pred_fallthru
            _
          %481 = vnop
        $region24: #{tpu_custom_call.1} parent=19 // pred_fallthru
          _
      $region20: #{tpu_custom_call.1} parent=5 // pred_fallthru
        _
      %p482 = scmp.le.s32.totalorder 1, %s11
      %p483 = scmp.lt.s32.totalorder %s11, 3
      %p484 = pnand %p482, %p483
      %p485 = pneg %p484
      // Predicated region
      $region87: #{tpu_custom_call.1} parent=5 // pred_check
        _
      $region88: #{tpu_custom_call.1} parent=5 // pred_check_branch
        %487 = sbr.rel (%p484) target = $region90
      $region89: #{tpu_custom_call.1} parent=5 // pred_region
        %s488 = ssub.s32 %s11, 1
        %s489 = sand.u32 %s38, 1
        %s490 = sand.u32 %s38, 1
        %s491 = smul.addr %s490, 144
        %s492 = scalar_lea.vmem [#allocation2], %s491
        // Predicated region
        $region91: #{tpu_custom_call.1} parent=89 // pred_check
          %p493 = pneg %p51
        $region92: #{tpu_custom_call.1} parent=89 // pred_check_branch
          %495 = sbr.rel (%p493) target = $region94
        $region93: #{tpu_custom_call.1} parent=89 // pred_region
          _
        $region94: #{tpu_custom_call.1} parent=89 // pred_fallthru
          _
        %s496 = sand.u32 %s38, 1
        %s497 = sand.u32 %s38, 1
        %s498 = smul.addr %s497, 144
        %s499 = scalar_lea.vmem [#allocation2], %s498
        %p500 = pneg %p51
        %p501 = pneg %p48
        %p502 = pneg %p72
        %p503 = pneg %p69
        %p504 = pneg %p100
        %p505 = pneg %p97
        %s506 = sand.u32 %s87, 1
        %s507 = scalar_lea.sflag [#allocation4], %s506
        %s508 = sand.u32 %s87, 1
        %s509 = smul.addr %s508, 32
        %s510 = scalar_lea.vmem [#allocation3], %s509
        %s511 = smul.u32 2, %s21
        %s512 = ssub.s32 3, %s511
        %p513 = scmp.lt.s32.totalorder %s512, 2
        %s514 = scalar_select %p513, %s512, 2
        %s515 = smul.u32 72, %s514
        %s516 = smul.u32 2, %s21
        %s517 = ssub.s32 3, %s516
        %p518 = scmp.lt.s32.totalorder %s517, 2
        %s519 = scalar_select %p518, %s517, 2
        %s520 = smul.u32 16, %s519
        %v521 = vld [vmem:[%s1] sm:$0xff]
        %v522 = vld [vmem:[%s1 + $0x8] sm:$0xff]
        %v523 = vld [vmem:[%s492] sm:$0xff]
        %v524 = vld [vmem:[%s492 + $0x8] sm:$0xff]
        %v525 = vld [vmem:[%s492 + $0x10] sm:$0xff]
        %v526 = vld [vmem:[%s492 + $0x18] sm:$0xff]
        %v527 = vld [vmem:[%s492 + $0x20] sm:$0xff]
        %v528 = vld [vmem:[%s492 + $0x28] sm:$0xff]
        %v529 = vld [vmem:[%s492 + $0x30] sm:$0xff]
        %v530 = vld [vmem:[%s492 + $0x38] sm:$0xff]
        %v531 = vld [vmem:[%s492 + $0x40] sm:$0xff]
        %v532 = vld [vmem:[%s492 + $0x48] sm:$0xff]
        %v533 = vld [vmem:[%s492 + $0x50] sm:$0xff]
        %v534 = vld [vmem:[%s492 + $0x58] sm:$0xff]
        %v535 = vld [vmem:[%s492 + $0x60] sm:$0xff]
        %v536 = vld [vmem:[%s492 + $0x68] sm:$0xff]
        %v537 = vld [vmem:[%s492 + $0x70] sm:$0xff]
        %v538 = vld [vmem:[%s492 + $0x78] sm:$0xff]
        %v539 = vld [vmem:[%s492 + $0x80] sm:$0x1]
        %v540 = vld [vmem:[%s492 + $0x88] sm:$0x1]
        %vm541 = vcmask 531456
        %v543 = vsel %vm541, %v521, 0
        %v546 = vsel %vm541, %v522, 0
        %vm548 = vcmask 1040384
        %v550 = vsel %vm548, %v539, 0
        %v553 = vsel %vm548, %v540, 0
        %555 = vmatpush.msra.mxu0 0.0
        %556 = vmatpush.msra.mxu0 0.0
        %557 = vmatpush.msra.mxu0 0.0
        %558 = vmatpush.msra.mxu0 0.0
        %559 = vmatpush.msra.mxu0 0.0
        %560 = vmatpush.msra.mxu0 0.0
        %561 = vmatpush.msra.mxu0 0.0
        %562 = vmatpush.msra.mxu0 %v550
        %563 = vmatpush.msra.mxu0 %v537
        %564 = vmatpush.msra.mxu0 %v535
        %565 = vmatpush.msra.mxu0 %v533
        %566 = vmatpush.msra.mxu0 %v531
        %567 = vmatpush.msra.mxu0 %v529
        %568 = vmatpush.msra.mxu0 %v527
        %569 = vmatpush.msra.mxu0 %v525
        %570 = vmatpush.msra.mxu0 %v523
        %571 = vmatmul.f32.gmra.mxu0 %v543
        %v572 = vpop.f32.mrf.mxu0
        %v573 = vadd.f32 0.0, %v572
        %574 = vmatmul.f32.gmra.mxu0 %v546
        %v575 = vpop.f32.mrf.mxu0
        %v576 = vadd.f32 0.0, %v575
        %577 = vdwg.mxu0
        %578 = vmatpush.msra.mxu0 0.0
        %579 = vmatpush.msra.mxu0 0.0
        %580 = vmatpush.msra.mxu0 0.0
        %581 = vmatpush.msra.mxu0 0.0
        %582 = vmatpush.msra.mxu0 0.0
        %583 = vmatpush.msra.mxu0 0.0
        %584 = vmatpush.msra.mxu0 0.0
        %585 = vmatpush.msra.mxu0 %v553
        %586 = vmatpush.msra.mxu0 %v538
        %587 = vmatpush.msra.mxu0 %v536
        %588 = vmatpush.msra.mxu0 %v534
        %589 = vmatpush.msra.mxu0 %v532
        %590 = vmatpush.msra.mxu0 %v530
        %591 = vmatpush.msra.mxu0 %v528
        %592 = vmatpush.msra.mxu0 %v526
        %593 = vmatpush.msra.mxu0 %v524
        %594 = vmatmul.f32.gmra.mxu0 %v543
        %v595 = vpop.f32.mrf.mxu0
        %v596 = vadd.f32 0.0, %v595
        %597 = vmatmul.f32.gmra.mxu0 %v546
        %v598 = vpop.f32.mrf.mxu0
        %v599 = vadd.f32 0.0, %v598
        %600 = vdwg.mxu0
        %601 = vst [vmem:[%s510] sm:$0xff] %v573
        %602 = vst [vmem:[%s510 + $0x8] sm:$0xff] %v596
        %603 = vst [vmem:[%s510 + $0x10] sm:$0xff] %v576
        %604 = vst [vmem:[%s510 + $0x18] sm:$0xff] %v599
        %s605 = sand.u32 %s87, 1
        %s606 = scalar_lea.sflag [#allocation4], %s605
        %s607 = sand.u32 %s87, 1
        %s608 = smul.addr %s607, 32
        %s609 = scalar_lea.vmem [#allocation3], %s608
        // Predicated region
        $region95: #{tpu_custom_call.1} parent=89 // pred_check
          %p610 = pneg %p97
        $region96: #{tpu_custom_call.1} parent=89 // pred_check_branch
          %612 = sbr.rel (%p610) target = $region98
        $region97: #{tpu_custom_call.1} parent=89 // pred_region
          %s613 = smul.u32 2, %s21
          %s614 = ssub.s32 3, %s613
          %p615 = scmp.lt.s32.totalorder %s614, 2
          %s616 = scalar_select %p615, %s614, 2
          %s617 = smul.u32 16, %s616
          %s618 = ssub.s32 32, %s617
          %s619 = sshll.u32 %s618, 4
          %620 = vsyncadd %s606, %s619
          %p621 = scmp.ne.s32.totalorder 0, %s617
          %s622 = smul.addr %s20, 6
          %s623 = sadd.s32 %s613, %s622
          %s624 = smul.addr %s623, 8
          %s625 = scalar_lea.hbm %s2, %s624
          %s626 = smul.u32 %s616, 8
          %s627 = smul.u32 %s626, 2
          %s628 = sshll.u32 %s609, 4
          %s629 = int_to_ptr.vmem [resolvable:$true] %s628
          %s630 = sshll.u32 %s625, 4
          %s631 = int_to_ptr.hbm [resolvable:$true] %s630
          %s632 = sshll.u32 %s627, 4
          %636 = dma.vmem_to_hbm [thread:$0]  (%p621), %s629, %s632, %s631, %s606, 256, 384, %s626
        $region98: #{tpu_custom_call.1} parent=89 // pred_fallthru
          _
      $region90: #{tpu_custom_call.1} parent=5 // pred_fallthru
        _
      %p637 = scmp.le.s32.totalorder 2, %s11
      // Predicated region
      $region99: #{tpu_custom_call.1} parent=5 // pred_check
        %p638 = pneg %p637
      $region100: #{tpu_custom_call.1} parent=5 // pred_check_branch
        %640 = sbr.rel (%p638) target = $region102
      $region101: #{tpu_custom_call.1} parent=5 // pred_region
        %s641 = ssub.s32 %s11, 2
        // Predicated region
        $region103: #{tpu_custom_call.1} parent=101 // pred_check
          %p642 = pneg %p103
        $region104: #{tpu_custom_call.1} parent=101 // pred_check_branch
          %644 = sbr.rel (%p642) target = $region106
        $region105: #{tpu_custom_call.1} parent=101 // pred_region
          %s645 = sand.u32 %s88, 1
          %s646 = scalar_lea.sflag [#allocation4], %s645
          %s647 = sand.u32 %s88, 1
          %s648 = smul.addr %s647, 32
          %s649 = scalar_lea.vmem [#allocation3], %s648
          %651 = dma.done %s646, 512
        $region106: #{tpu_custom_call.1} parent=101 // pred_fallthru
          _
      $region102: #{tpu_custom_call.1} parent=5 // pred_fallthru
        _
    $region6: #{tpu_custom_call.1} parent=1 // loop_footer
      %s15 = sadd.s32 1, %s11
    $region7: #{tpu_custom_call.1} parent=1 // loop_footer_branch
      %10 = sbr.rel target = $region3
    $region8: #{tpu_custom_call.1} parent=1 // loop_exit
      _
    %652 = vsyncpa [#allocation4], 1
    %s653 = scalar_lea.sflag [#allocation4], 1
    %654 = vsyncpa %s653, 1

</llo_original>
